<compile_context>
chip_gen: v7x
topology: tpu7x:2x2x1
jax: 0.10.0
libtpu: 0.0.40
codegen_flags: <defaults>
</compile_context>

<pallas_src>
import functools

import jax
import jax.numpy as jnp
from jax.experimental import pallas as pl
from jax.experimental.pallas import tpu as pltpu


def _pooled_tile(m_ref, mp_ref, *, block_size, h, w):
    """pooled = maxpool_{bs x bs, stride 1}(mask) for one BC tile.

    Zero padding of the {0,1} mask reproduces PyTorch's max_pool2d padding
    (plus the [:-1, :-1] trim for even block_size).  Returns pooled in f32,
    with value 1.0 exactly where the element falls inside a dropped block.
    """
    pad_lo = block_size // 2
    pad_hi = block_size - 1 - pad_lo
    hp = h + block_size - 1
    wp = w + block_size - 1
    tbc = mp_ref.shape[0]

    # Halo-only zeroing: the (h, w) interior is fully overwritten below, so
    # only the (block_size - 1)-wide boundary strips need clearing each step
    # (correct regardless of how the grid axis is sharded across TensorCores).
    if pad_lo > 0:
        mp_ref[:, 0:pad_lo, :] = jnp.zeros((tbc, pad_lo, wp), jnp.float32)
        mp_ref[:, :, 0:pad_lo] = jnp.zeros((tbc, hp, pad_lo), jnp.float32)
    if pad_hi > 0:
        mp_ref[:, pad_lo + h:hp, :] = jnp.zeros((tbc, pad_hi, wp), jnp.float32)
        mp_ref[:, :, pad_lo + w:wp] = jnp.zeros((tbc, hp, pad_hi), jnp.float32)
    # TODO(synk): a fully int8 pool (int8 scratch + int8 maxes) would cut the
    # scratch 4x but needs packed-sublane offset relayouts; kept f32 for a
    # guaranteed-clean lowering.
    mp_ref[:, pad_lo:pad_lo + h, pad_lo:pad_lo + w] = m_ref[...].astype(jnp.float32)

    # Separable stride-1 max pool: bs shifted maxes along W, then bs along H
    # (2*bs slice-maxes instead of bs^2).
    pw = mp_ref[:, :, 0:w]
    for dw in range(1, block_size):
        pw = jnp.maximum(pw, mp_ref[:, :, dw:dw + w])
    pooled = pw[:, 0:h, :]
    for dh in range(1, block_size):
        pooled = jnp.maximum(pooled, pw[:, dh:dh + h, :])
    return pooled


def _sum_kernel(m_ref, cnt_ref, mp_ref, *, block_size, h, w):
    pooled = _pooled_tile(m_ref, mp_ref, block_size=block_size, h=h, w=w)
    # Count of *dropped* positions, reduced in-kernel over the BC-tile and H
    # axes; only a (1, 1, W) f32 row is written back per tile.  f32
    # accumulation mirrors PyTorch's block_mask.sum() (a float sum).
    s = jnp.sum(pooled, axis=0, keepdims=True)        # (1, h, w)
    cnt_ref[...] = jnp.sum(s, axis=1, keepdims=True)  # (1, 1, w)


def _apply_kernel(scale_ref, x_ref, m_ref, out_ref, mp_ref, *, block_size, h, w):
    pooled = _pooled_tile(m_ref, mp_ref, block_size=block_size, h=h, w=w)
    scale = scale_ref[0]
    x_scaled = x_ref[...].astype(jnp.float32) * scale
    # Select instead of multiplying by (1 - pooled): one fewer full-tile
    # convert and one fewer multiply per element (VALU relief).
    out_ref[...] = jnp.where(pooled > 0.0, jnp.float32(0.0), x_scaled).astype(out_ref.dtype)


def _round_up(x, m):
    return (x + m - 1) // m * m


def _pick_tile_bc(bc, h, w, block_size, x_itemsize, *, budget_bytes, cap=1024):
    """Largest BC-tile whose *lane/sublane-padded* VMEM working set fits the
    budget.  Prefers an exact divisor of bc (no padding); otherwise returns
    the budget-limited tile and the caller pads bc up to a multiple."""
    hp = h + block_size - 1
    wp = w + block_size - 1
    lanes_w = _round_up(w, 128)
    lanes_wp = _round_up(wp, 128)
    sub_x = _round_up(h, max(8, 32 // max(1, x_itemsize)))   # x/out sublane tile
    sub_i8 = _round_up(h, 32)                                # int8 mask sublane tile
    sub_f32_h = _round_up(h, 8)
    sub_f32_hp = _round_up(hp, 8)
    per_ch = (
        2 * 2 * sub_x * lanes_w * x_itemsize        # x in + out, double-buffered
        + 2 * sub_i8 * lanes_w * 1                  # int8 mask, double-buffered
        + sub_f32_hp * lanes_wp * 4                 # padded f32 pool scratch
        + (sub_f32_hp + 2 * sub_f32_h) * lanes_w * 4  # pw / pooled / select temporaries
    )
    max_tile = int(max(1, min(cap, budget_bytes // per_ch, bc)))
    # Exact divisor within 2x of the budget cap avoids padding entirely.
    for t in range(max_tile, max(0, max_tile // 2), -1):
        if bc % t == 0:
            return t
    return max_tile


def dropblock2d_channel_pallas(x, mask, *, block_size):
    """x: (B, C, H, W); mask: Bernoulli(gamma) samples with values {0, 1}."""
    b, c, h, w = x.shape
    bc = b * c
    x3 = x.reshape(bc, h, w)
    m3 = mask.reshape(bc, h, w).astype(jnp.int8)  # 8-bit mask: 4x fewer HBM bytes than f32

    # Generation-aware VMEM budget (v5e/v6e: 128 MiB, v7x: 64 MiB per core).
    try:
        vmem_cap = int(pltpu.get_tpu_info().vmem_capacity_bytes)
    except Exception:
        vmem_cap = 64 * 1024 * 1024
    vmem_limit = int(min(max(vmem_cap * 3 // 4, 32 * 1024 * 1024), 128 * 1024 * 1024))
    budget = int(vmem_limit * 0.6)  # headroom for Mosaic internals / estimate error

    tile_bc = _pick_tile_bc(bc, h, w, block_size, x.dtype.itemsize, budget_bytes=budget)
    num_tiles = (bc + tile_bc - 1) // tile_bc
    bc_pad = num_tiles * tile_bc
    if bc_pad != bc:
        # Zero-mask padding contributes zero dropped positions, so the global
        # count stays exact; padded output rows are sliced off below.
        x3 = jnp.pad(x3, ((0, bc_pad - bc), (0, 0), (0, 0)))
        m3 = jnp.pad(m3, ((0, bc_pad - bc), (0, 0), (0, 0)))

    hp = h + block_size - 1
    wp = w + block_size - 1

    cparams = pltpu.CompilerParams(
        dimension_semantics=("parallel",),   # BC tiles are independent (v7x: 2 TCs)
        vmem_limit_bytes=vmem_limit,
    )

    # Pass 1: mask-only traffic -> per-tile dropped-position counts (tiny output).
    tile_counts = pl.pallas_call(
        functools.partial(_sum_kernel, block_size=block_size, h=h, w=w),
        out_shape=jax.ShapeDtypeStruct((num_tiles, 1, w), jnp.float32),
        grid=(num_tiles,),
        in_specs=[pl.BlockSpec((tile_bc, h, w), lambda i: (i, 0, 0))],
        out_specs=pl.BlockSpec((1, 1, w), lambda i: (i, 0, 0)),
        scratch_shapes=[pltpu.VMEM((tile_bc, hp, wp), jnp.float32)],
        compiler_params=cparams,
    )(m3)

    dropped = jnp.sum(tile_counts)
    numel = jnp.float32(bc * h * w)            # true numel (excludes BC padding)
    # NOTE: mirrors PyTorch exactly — if every element is dropped the scale is
    # numel / 0 = inf, the same hazard as block_mask.numel() / block_mask.sum().
    scale = (numel / (numel - dropped)).reshape(1).astype(jnp.float32)

    # Pass 2: recompute the (cheap) pool per tile, apply select(pooled, 0, x*scale).
    out3 = pl.pallas_call(
        functools.partial(_apply_kernel, block_size=block_size, h=h, w=w),
        out_shape=jax.ShapeDtypeStruct((bc_pad, h, w), x.dtype),
        grid=(num_tiles,),
        in_specs=[
            pl.BlockSpec(memory_space=pltpu.MemorySpace.SMEM),    # scale, (1,) f32
            pl.BlockSpec((tile_bc, h, w), lambda i: (i, 0, 0)),   # x
            pl.BlockSpec((tile_bc, h, w), lambda i: (i, 0, 0)),   # mask (int8)
        ],
        out_specs=pl.BlockSpec((tile_bc, h, w), lambda i: (i, 0, 0)),
        scratch_shapes=[pltpu.VMEM((tile_bc, hp, wp), jnp.float32)],
        compiler_params=cparams,
    )(scale, x3, m3)
    if bc_pad != bc:
        out3 = out3[:bc]
    # TODO(synk): a channels-on-lanes layout (H, W, B*C) would make the output
    # lane-dense for small W; only worth it if the surrounding model is NHWC.
    return out3.reshape(b, c, h, w)


def dropblock_forward(x, key, *, drop_prob, block_size, training=True):
    """Mirrors DropBlock2D_Channel.forward."""
    if not training or drop_prob == 0.0:
        return x
    _, _, h, w = x.shape
    gamma = drop_prob / block_size ** 2
    gamma *= h * w / ((h - block_size + 1) * (w - block_size + 1))
    # TODO(synk): torch.rand's bit-stream is not reproducible in JAX; the
    # Bernoulli(gamma) mask is drawn with jax.random (same distribution).
    # In-kernel generation via pltpu.prng_seed / prng_random_bits would remove
    # the mask's HBM round-trip entirely.
    mask = (jax.random.uniform(key, x.shape) < gamma).astype(jnp.int8)
    return dropblock2d_channel_pallas(x, mask, block_size=block_size)


def _reference(x, mask_f32, block_size):
    """Pure-JAX reference matching the PyTorch module (given the same mask)."""
    pad = block_size // 2
    pooled = jax.lax.reduce_window(
        mask_f32, -jnp.inf, jax.lax.max,
        (1, 1, block_size, block_size), (1, 1, 1, 1),
        padding=((0, 0), (0, 0), (pad, pad), (pad, pad)),
    )
    if block_size % 2 == 0:
        pooled = pooled[:, :, :-1, :-1]
    block_mask = 1.0 - pooled
    out = x * block_mask
    return out * block_mask.size / block_mask.sum()


if __name__ == "__main__":
    drop_prob = 0.1
    block_size = 3
    B, C, H, W = 2, 4, 16, 16

    key = jax.random.PRNGKey(0)
    kx, kmask = jax.random.split(key)
    x = jax.random.normal(kx, (B, C, H, W), dtype=jnp.float32)

    gamma = drop_prob / block_size ** 2
    gamma *= H * W / ((H - block_size + 1) * (W - block_size + 1))
    mask = (jax.random.uniform(kmask, x.shape) < gamma).astype(jnp.int8)

    out = dropblock2d_channel_pallas(x, mask, block_size=block_size)
    out = jax.block_until_ready(out)

    ref = _reference(x, mask.astype(jnp.float32), block_size)
    assert out.shape == x.shape and out.dtype == x.dtype
    assert jnp.allclose(out, ref, atol=1e-5, rtol=1e-5), "mismatch vs reference"

    print("KERNEL_OK")
</pallas_src>

<mosaic_0001>
module attributes {stable_mosaic.version = 11 : i64} {
  func.func @_sum_kernel(%arg0: i32, %arg1: memref<8x16x16xi8, #tpu.memory_space<vmem>>, %arg2: memref<1x1x16xf32, #tpu.memory_space<vmem>>, %arg3: memref<8x18x18xf32, #tpu.memory_space<vmem>>) attributes {dimension_semantics = [#tpu.dimension_semantics<parallel>], iteration_bounds = array<i64: 1>, scalar_prefetch = 0 : i64, scratch_operands = 1 : i64, tpu.core_type = #tpu.core_type<tc>, window_params = [{transform_indices = @transform_0, window_bounds = array<i64: 8, 16, 16>}, {transform_indices = @transform_1, window_bounds = array<i64: 1, 1, 16>}]} {
    %cst = arith.constant 0.000000e+00 : f32
    %0 = vector.broadcast %cst : f32 to vector<8x1x18xf32>
    %c0 = arith.constant 0 : index
    %c0_0 = arith.constant 0 : index
    %c0_1 = arith.constant 0 : index
    %1 = vector.load %arg3[%c0, %c0_0, %c0_1] : memref<8x18x18xf32, #tpu.memory_space<vmem>>, vector<8x1x18xf32>
    tpu.vector_store %arg3[%c0, %c0_0, %c0_1], %0 {strides = array<i32>} : memref<8x18x18xf32, #tpu.memory_space<vmem>>, vector<8x1x18xf32>,
    %cst_2 = arith.constant 0.000000e+00 : f32
    %2 = vector.broadcast %cst_2 : f32 to vector<8x18x1xf32>
    %c0_3 = arith.constant 0 : index
    %c0_4 = arith.constant 0 : index
    %c0_5 = arith.constant 0 : index
    %3 = vector.load %arg3[%c0_3, %c0_4, %c0_5] : memref<8x18x18xf32, #tpu.memory_space<vmem>>, vector<8x18x1xf32>
    tpu.vector_store %arg3[%c0_3, %c0_4, %c0_5], %2 {strides = array<i32>} : memref<8x18x18xf32, #tpu.memory_space<vmem>>, vector<8x18x1xf32>,
    %cst_6 = arith.constant 0.000000e+00 : f32
    %4 = vector.broadcast %cst_6 : f32 to vector<8x1x18xf32>
    %c0_7 = arith.constant 0 : index
    %c17 = arith.constant 17 : index
    %c0_8 = arith.constant 0 : index
    %5 = vector.load %arg3[%c0_7, %c17, %c0_8] : memref<8x18x18xf32, #tpu.memory_space<vmem>>, vector<8x1x18xf32>
    tpu.vector_store %arg3[%c0_7, %c17, %c0_8], %4 {strides = array<i32>} : memref<8x18x18xf32, #tpu.memory_space<vmem>>, vector<8x1x18xf32>,
    %cst_9 = arith.constant 0.000000e+00 : f32
    %6 = vector.broadcast %cst_9 : f32 to vector<8x18x1xf32>
    %c0_10 = arith.constant 0 : index
    %c0_11 = arith.constant 0 : index
    %c17_12 = arith.constant 17 : index
    %7 = vector.load %arg3[%c0_10, %c0_11, %c17_12] : memref<8x18x18xf32, #tpu.memory_space<vmem>>, vector<8x18x1xf32>
    tpu.vector_store %arg3[%c0_10, %c0_11, %c17_12], %6 {strides = array<i32>} : memref<8x18x18xf32, #tpu.memory_space<vmem>>, vector<8x18x1xf32>,
    %c0_13 = arith.constant 0 : index
    %c0_14 = arith.constant 0 : index
    %c0_15 = arith.constant 0 : index
    %8 = vector.load %arg1[%c0_13, %c0_14, %c0_15] : memref<8x16x16xi8, #tpu.memory_space<vmem>>, vector<8x16x16xi8>
    %9 = arith.sitofp %8 : vector<8x16x16xi8> to vector<8x16x16xf32>
    %c0_16 = arith.constant 0 : index
    %c1 = arith.constant 1 : index
    %c1_17 = arith.constant 1 : index
    %10 = vector.load %arg3[%c0_16, %c1, %c1_17] : memref<8x18x18xf32, #tpu.memory_space<vmem>>, vector<8x16x16xf32>
    tpu.vector_store %arg3[%c0_16, %c1, %c1_17], %9 {strides = array<i32>} : memref<8x18x18xf32, #tpu.memory_space<vmem>>, vector<8x16x16xf32>,
    %c0_18 = arith.constant 0 : index
    %c0_19 = arith.constant 0 : index
    %c0_20 = arith.constant 0 : index
    %11 = vector.load %arg3[%c0_18, %c0_19, %c0_20] : memref<8x18x18xf32, #tpu.memory_space<vmem>>, vector<8x18x16xf32>
    %c0_21 = arith.constant 0 : index
    %c0_22 = arith.constant 0 : index
    %c1_23 = arith.constant 1 : index
    %12 = vector.load %arg3[%c0_21, %c0_22, %c1_23] : memref<8x18x18xf32, #tpu.memory_space<vmem>>, vector<8x18x16xf32>
    %13 = arith.maximumf %11, %12 : vector<8x18x16xf32>
    %c0_24 = arith.constant 0 : index
    %c0_25 = arith.constant 0 : index
    %c2 = arith.constant 2 : index
    %14 = vector.load %arg3[%c0_24, %c0_25, %c2] : memref<8x18x18xf32, #tpu.memory_space<vmem>>, vector<8x18x16xf32>
    %15 = arith.maximumf %13, %14 : vector<8x18x16xf32>
    %16 = vector.extract_strided_slice %15 {offsets = [0, 0, 0], sizes = [8, 16, 16], strides = [1, 1, 1]} : vector<8x18x16xf32> to vector<8x16x16xf32>
    %17 = vector.extract_strided_slice %15 {offsets = [0, 1, 0], sizes = [8, 16, 16], strides = [1, 1, 1]} : vector<8x18x16xf32> to vector<8x16x16xf32>
    %18 = arith.maximumf %16, %17 : vector<8x16x16xf32>
    %19 = vector.extract_strided_slice %15 {offsets = [0, 2, 0], sizes = [8, 16, 16], strides = [1, 1, 1]} : vector<8x18x16xf32> to vector<8x16x16xf32>
    %20 = arith.maximumf %18, %19 : vector<8x16x16xf32>
    %cst_26 = arith.constant dense<0.000000e+00> : vector<16x16xf32>
    %21 = vector.multi_reduction <add>, %20, %cst_26 [0] : vector<8x16x16xf32> to vector<16x16xf32>
    %22 = vector.shape_cast %21 : vector<16x16xf32> to vector<1x16x16xf32>
    %cst_27 = arith.constant dense<0.000000e+00> : vector<1x16xf32>
    %23 = vector.multi_reduction <add>, %22, %cst_27 [1] : vector<1x16x16xf32> to vector<1x16xf32>
    %24 = vector.shape_cast %23 : vector<1x16xf32> to vector<1x1x16xf32>
    %c0_28 = arith.constant 0 : index
    %c0_29 = arith.constant 0 : index
    %c0_30 = arith.constant 0 : index
    %25 = vector.load %arg2[%c0_28, %c0_29, %c0_30] : memref<1x1x16xf32, #tpu.memory_space<vmem>>, vector<1x1x16xf32>
    tpu.vector_store %arg2[%c0_28, %c0_29, %c0_30], %24 {strides = array<i32>} : memref<1x1x16xf32, #tpu.memory_space<vmem>>, vector<1x1x16xf32>,
    return
  }
  func.func @transform_0(%arg0: i32) -> (i32, i32, i32) {
    %c0_i32 = arith.constant 0 : i32
    %c0_i32_0 = arith.constant 0 : i32
    %c0_i32_1 = arith.constant 0 : i32
    return %arg0, %c0_i32, %c0_i32_0 : i32, i32, i32
  }
  func.func @transform_1(%arg0: i32) -> (i32, i32, i32) {
    %c0_i32 = arith.constant 0 : i32
    %c0_i32_0 = arith.constant 0 : i32
    %c0_i32_1 = arith.constant 0 : i32
    return %arg0, %c0_i32, %c0_i32_0 : i32, i32, i32
  }
}

</mosaic_0001>

<llo_original>
// kernel: tpu_custom_call.1
$region0: #{tpu_custom_call.1}
  #allocation0 [shape = 'u32[]', space=smem, size = 0x4, offset = 0x4, fixed_abs, tag = 'smem constant byte address 0x4 - core index']
  #allocation1 [shape = 'u32[144,128]{1,0:T(1,128)}', space=vmem, size = 0x12000, scoped, tag = 'internal scratch']
  #allocation2 [shape = 'f32[8,18,18]{2,1,0:T(8,128)}', space=vmem, size = 0x18000, scoped, tag = 'scratch operand']
  %s0 = inlined_call_operand.hbm [shape: s8[8,16,16], index: 0, kind: input, shape index: {}]
  %s1 = inlined_call_operand.hbm [shape: f32[1,1,16], index: 1, kind: output, shape index: {}]
  %s2 = sld [smem:[#allocation0]]
  $region18: #{tpu_custom_call.1} parent=0
    _
  %s4 = ssub.s32 1, %s2
  %s5 = scalar_select 0, %s4, %s2
  $region1: #{tpu_custom_call.1} parent=0
    #allocation3 [shape = 'u8[16384]{0}', space=vmem, size = 0x4000, scoped, tag = 'input window, operand 0, single buffered']
    #allocation4 [shape = 's32[1]{0}', space=sflag, size = 0x4, scoped, tag = 'scoped memory for tpu_custom_call.1']
    #allocation5 [shape = 's32[1]{0}', space=sflag, size = 0x4, scoped, tag = 'scoped memory for tpu_custom_call.1']
    #allocation6 [shape = 'u8[512]{0}', space=vmem, size = 0x400, scoped, tag = 'output window, operand 0, single buffered']
    %6 = vsyncpa [#allocation4], 0
    %7 = vsyncpa [#allocation5], 0
    // Predicated region
    $region2: #{tpu_custom_call.1} parent=1 // pred_check
      _
    $region3: #{tpu_custom_call.1} parent=1 // pred_check_branch
      %9 = sbr.rel (0) target = $region5
    $region4: #{tpu_custom_call.1} parent=1 // pred_region
      %s11 = ssub.s32 512, 512
      %12 = vsyncadd [#allocation4], %s11
      %s13 = sshll.u32 [#allocation3], 4
      %s14 = int_to_ptr.vmem [resolvable:$true] %s13
      %19 = dma.hbm_to_vmem [thread:$0]  %s0, 512, %s14, [#allocation4], 32, 32, 2
    $region5: #{tpu_custom_call.1} parent=1 // pred_fallthru
      _
    // Predicated region
    $region6: #{tpu_custom_call.1} parent=1 // pred_check
      _
    $region7: #{tpu_custom_call.1} parent=1 // pred_check_branch
      %21 = sbr.rel (0) target = $region9
    $region8: #{tpu_custom_call.1} parent=1 // pred_region
      %22 = dma.done [#allocation4], 512
    $region9: #{tpu_custom_call.1} parent=1 // pred_fallthru
      _
    %vm23 = vcmask 139264
    %24 = vst.msk [vmem:[#allocation2] sm:$0x1] %vm23, 0.0
    %25 = vst.msk [vmem:[#allocation2 + $0x18] sm:$0x1] %vm23, 0.0
    %26 = vst.msk [vmem:[#allocation2 + $0x30] sm:$0x1] %vm23, 0.0
    %27 = vst.msk [vmem:[#allocation2 + $0x48] sm:$0x1] %vm23, 0.0
    %28 = vst.msk [vmem:[#allocation2 + $0x60] sm:$0x1] %vm23, 0.0
    %29 = vst.msk [vmem:[#allocation2 + $0x78] sm:$0x1] %vm23, 0.0
    %30 = vst.msk [vmem:[#allocation2 + $0x90] sm:$0x1] %vm23, 0.0
    %31 = vst.msk [vmem:[#allocation2 + $0xa8] sm:$0x1] %vm23, 0.0
    %vm32 = vcmask 7168
    %33 = vst.msk [vmem:[#allocation2] sm:$0xff] %vm32, 0.0
    %34 = vst.msk [vmem:[#allocation2 + $0x8] sm:$0xff] %vm32, 0.0
    %vm35 = vcmask 1024
    %36 = vst.msk [vmem:[#allocation2 + $0x10] sm:$0x3] %vm35, 0.0
    %37 = vst.msk [vmem:[#allocation2 + $0x18] sm:$0xff] %vm32, 0.0
    %38 = vst.msk [vmem:[#allocation2 + $0x20] sm:$0xff] %vm32, 0.0
    %39 = vst.msk [vmem:[#allocation2 + $0x28] sm:$0x3] %vm35, 0.0
    %40 = vst.msk [vmem:[#allocation2 + $0x30] sm:$0xff] %vm32, 0.0
    %41 = vst.msk [vmem:[#allocation2 + $0x38] sm:$0xff] %vm32, 0.0
    %42 = vst.msk [vmem:[#allocation2 + $0x40] sm:$0x3] %vm35, 0.0
    %43 = vst.msk [vmem:[#allocation2 + $0x48] sm:$0xff] %vm32, 0.0
    %44 = vst.msk [vmem:[#allocation2 + $0x50] sm:$0xff] %vm32, 0.0
    %45 = vst.msk [vmem:[#allocation2 + $0x58] sm:$0x3] %vm35, 0.0
    %46 = vst.msk [vmem:[#allocation2 + $0x60] sm:$0xff] %vm32, 0.0
    %47 = vst.msk [vmem:[#allocation2 + $0x68] sm:$0xff] %vm32, 0.0
    %48 = vst.msk [vmem:[#allocation2 + $0x70] sm:$0x3] %vm35, 0.0
    %49 = vst.msk [vmem:[#allocation2 + $0x78] sm:$0xff] %vm32, 0.0
    %50 = vst.msk [vmem:[#allocation2 + $0x80] sm:$0xff] %vm32, 0.0
    %51 = vst.msk [vmem:[#allocation2 + $0x88] sm:$0x3] %vm35, 0.0
    %52 = vst.msk [vmem:[#allocation2 + $0x90] sm:$0xff] %vm32, 0.0
    %53 = vst.msk [vmem:[#allocation2 + $0x98] sm:$0xff] %vm32, 0.0
    %54 = vst.msk [vmem:[#allocation2 + $0xa0] sm:$0x3] %vm35, 0.0
    %55 = vst.msk [vmem:[#allocation2 + $0xa8] sm:$0xff] %vm32, 0.0
    %56 = vst.msk [vmem:[#allocation2 + $0xb0] sm:$0xff] %vm32, 0.0
    %57 = vst.msk [vmem:[#allocation2 + $0xb8] sm:$0x3] %vm35, 0.0
    %58 = vst.msk [vmem:[#allocation2 + $0x11] sm:$0x1] %vm23, 0.0
    %59 = vst.msk [vmem:[#allocation2 + $0x29] sm:$0x1] %vm23, 0.0
    %60 = vst.msk [vmem:[#allocation2 + $0x41] sm:$0x1] %vm23, 0.0
    %61 = vst.msk [vmem:[#allocation2 + $0x59] sm:$0x1] %vm23, 0.0
    %62 = vst.msk [vmem:[#allocation2 + $0x71] sm:$0x1] %vm23, 0.0
    %63 = vst.msk [vmem:[#allocation2 + $0x89] sm:$0x1] %vm23, 0.0
    %64 = vst.msk [vmem:[#allocation2 + $0xa1] sm:$0x1] %vm23, 0.0
    %65 = vst.msk [vmem:[#allocation2 + $0xb9] sm:$0x1] %vm23, 0.0
    %vm66 = vcmask 146568
    %67 = vst.msk [vmem:[#allocation2] sm:$0xff] %vm66, 0.0
    %68 = vst.msk [vmem:[#allocation2 + $0x8] sm:$0xff] %vm66, 0.0
    %vm69 = vcmask 140424
    %70 = vst.msk [vmem:[#allocation2 + $0x10] sm:$0x3] %vm69, 0.0
    %71 = vst.msk [vmem:[#allocation2 + $0x18] sm:$0xff] %vm66, 0.0
    %72 = vst.msk [vmem:[#allocation2 + $0x20] sm:$0xff] %vm66, 0.0
    %73 = vst.msk [vmem:[#allocation2 + $0x28] sm:$0x3] %vm69, 0.0
    %74 = vst.msk [vmem:[#allocation2 + $0x30] sm:$0xff] %vm66, 0.0
    %75 = vst.msk [vmem:[#allocation2 + $0x38] sm:$0xff] %vm66, 0.0
    %76 = vst.msk [vmem:[#allocation2 + $0x40] sm:$0x3] %vm69, 0.0
    %77 = vst.msk [vmem:[#allocation2 + $0x48] sm:$0xff] %vm66, 0.0
    %78 = vst.msk [vmem:[#allocation2 + $0x50] sm:$0xff] %vm66, 0.0
    %79 = vst.msk [vmem:[#allocation2 + $0x58] sm:$0x3] %vm69, 0.0
    %80 = vst.msk [vmem:[#allocation2 + $0x60] sm:$0xff] %vm66, 0.0
    %81 = vst.msk [vmem:[#allocation2 + $0x68] sm:$0xff] %vm66, 0.0
    %82 = vst.msk [vmem:[#allocation2 + $0x70] sm:$0x3] %vm69, 0.0
    %83 = vst.msk [vmem:[#allocation2 + $0x78] sm:$0xff] %vm66, 0.0
    %84 = vst.msk [vmem:[#allocation2 + $0x80] sm:$0xff] %vm66, 0.0
    %85 = vst.msk [vmem:[#allocation2 + $0x88] sm:$0x3] %vm69, 0.0
    %86 = vst.msk [vmem:[#allocation2 + $0x90] sm:$0xff] %vm66, 0.0
    %87 = vst.msk [vmem:[#allocation2 + $0x98] sm:$0xff] %vm66, 0.0
    %88 = vst.msk [vmem:[#allocation2 + $0xa0] sm:$0x3] %vm69, 0.0
    %89 = vst.msk [vmem:[#allocation2 + $0xa8] sm:$0xff] %vm66, 0.0
    %90 = vst.msk [vmem:[#allocation2 + $0xb0] sm:$0xff] %vm66, 0.0
    %91 = vst.msk [vmem:[#allocation2 + $0xb8] sm:$0x3] %vm69, 0.0
    %v92 = vld [vmem:[#allocation3] sm:$0x3]
    %v93 = vld [vmem:[#allocation3 + $0x2] sm:$0x3]
    %v94 = vld [vmem:[#allocation3 + $0x4] sm:$0x3]
    %v95 = vld [vmem:[#allocation3 + $0x6] sm:$0x3]
    %v96 = vld [vmem:[#allocation3 + $0x8] sm:$0x3]
    %v97 = vld [vmem:[#allocation3 + $0xa] sm:$0x3]
    %v98 = vld [vmem:[#allocation3 + $0xc] sm:$0x3]
    %v99 = vld [vmem:[#allocation3 + $0xe] sm:$0x3]
    %v100 = vld [vmem:[#allocation3 + $0x10] sm:$0x3]
    %v101 = vld [vmem:[#allocation3 + $0x12] sm:$0x3]
    %v102 = vld [vmem:[#allocation3 + $0x14] sm:$0x3]
    %v103 = vld [vmem:[#allocation3 + $0x16] sm:$0x3]
    %v104 = vld [vmem:[#allocation3 + $0x18] sm:$0x3]
    %v105 = vld [vmem:[#allocation3 + $0x1a] sm:$0x3]
    %v106 = vld [vmem:[#allocation3 + $0x1c] sm:$0x3]
    %v107 = vld [vmem:[#allocation3 + $0x1e] sm:$0x3]
    %v108 = vunpack.c.0.s8 %v92
    %v109 = vunpack.c.0.s8 %v93
    %v110 = vunpack.c.0.s8 %v94
    %v111 = vunpack.c.0.s8 %v95
    %v112 = vunpack.c.0.s8 %v96
    %v113 = vunpack.c.0.s8 %v97
    %v114 = vunpack.c.0.s8 %v98
    %v115 = vunpack.c.0.s8 %v99
    %v116 = vunpack.c.0.s8 %v100
    %v117 = vunpack.c.0.s8 %v101
    %v118 = vunpack.c.0.s8 %v102
    %v119 = vunpack.c.0.s8 %v103
    %v120 = vunpack.c.0.s8 %v104
    %v121 = vunpack.c.0.s8 %v105
    %v122 = vunpack.c.0.s8 %v106
    %v123 = vunpack.c.0.s8 %v107
    %v124 = vcvt.s32.f32 %v108
    %v125 = vcvt.s32.f32 %v109
    %v126 = vcvt.s32.f32 %v110
    %v127 = vcvt.s32.f32 %v111
    %v128 = vcvt.s32.f32 %v112
    %v129 = vcvt.s32.f32 %v113
    %v130 = vcvt.s32.f32 %v114
    %v131 = vcvt.s32.f32 %v115
    %v132 = vcvt.s32.f32 %v116
    %v133 = vcvt.s32.f32 %v117
    %v134 = vcvt.s32.f32 %v118
    %v135 = vcvt.s32.f32 %v119
    %v136 = vcvt.s32.f32 %v120
    %v137 = vcvt.s32.f32 %v121
    %v138 = vcvt.s32.f32 %v122
    %v139 = vcvt.s32.f32 %v123
    %156 = vrot.lane.b32.xlu0 %v124, 1
    %v157 = vpop.permute.xlu0 %156
    %158 = vrot.lane.b32.xlu0 %v125, 1
    %v159 = vpop.permute.xlu0 %158
    %160 = vrot.lane.b32.xlu0 %v126, 1
    %v161 = vpop.permute.xlu0 %160
    %162 = vrot.lane.b32.xlu0 %v127, 1
    %v163 = vpop.permute.xlu0 %162
    %164 = vrot.lane.b32.xlu0 %v128, 1
    %v165 = vpop.permute.xlu0 %164
    %166 = vrot.lane.b32.xlu0 %v129, 1
    %v167 = vpop.permute.xlu0 %166
    %168 = vrot.lane.b32.xlu0 %v130, 1
    %v169 = vpop.permute.xlu0 %168
    %170 = vrot.lane.b32.xlu0 %v131, 1
    %v171 = vpop.permute.xlu0 %170
    %172 = vrot.lane.b32.xlu0 %v132, 1
    %v173 = vpop.permute.xlu0 %172
    %174 = vrot.lane.b32.xlu0 %v133, 1
    %v175 = vpop.permute.xlu0 %174
    %176 = vrot.lane.b32.xlu0 %v134, 1
    %v177 = vpop.permute.xlu0 %176
    %178 = vrot.lane.b32.xlu0 %v135, 1
    %v179 = vpop.permute.xlu0 %178
    %180 = vrot.lane.b32.xlu0 %v136, 1
    %v181 = vpop.permute.xlu0 %180
    %182 = vrot.lane.b32.xlu0 %v137, 1
    %v183 = vpop.permute.xlu0 %182
    %184 = vrot.lane.b32.xlu0 %v138, 1
    %v185 = vpop.permute.xlu0 %184
    %186 = vrot.lane.b32.xlu0 %v139, 1
    %v187 = vpop.permute.xlu0 %186
    %vm204 = vcmask 138248
    %205 = vst.msk [vmem:[#allocation2 + $0x1] sm:$0xff] %vm204, %v157
    %206 = vst.msk [vmem:[#allocation2 + $0x9] sm:$0xff] %vm204, %v159
    %207 = vst.msk [vmem:[#allocation2 + $0x19] sm:$0xff] %vm204, %v161
    %208 = vst.msk [vmem:[#allocation2 + $0x21] sm:$0xff] %vm204, %v163
    %209 = vst.msk [vmem:[#allocation2 + $0x31] sm:$0xff] %vm204, %v165
    %210 = vst.msk [vmem:[#allocation2 + $0x39] sm:$0xff] %vm204, %v167
    %211 = vst.msk [vmem:[#allocation2 + $0x49] sm:$0xff] %vm204, %v169
    %212 = vst.msk [vmem:[#allocation2 + $0x51] sm:$0xff] %vm204, %v171
    %213 = vst.msk [vmem:[#allocation2 + $0x61] sm:$0xff] %vm204, %v173
    %214 = vst.msk [vmem:[#allocation2 + $0x69] sm:$0xff] %vm204, %v175
    %215 = vst.msk [vmem:[#allocation2 + $0x79] sm:$0xff] %vm204, %v177
    %216 = vst.msk [vmem:[#allocation2 + $0x81] sm:$0xff] %vm204, %v179
    %217 = vst.msk [vmem:[#allocation2 + $0x91] sm:$0xff] %vm204, %v181
    %218 = vst.msk [vmem:[#allocation2 + $0x99] sm:$0xff] %vm204, %v183
    %219 = vst.msk [vmem:[#allocation2 + $0xa9] sm:$0xff] %vm204, %v185
    %220 = vst.msk [vmem:[#allocation2 + $0xb1] sm:$0xff] %vm204, %v187
    %v221 = vld [vmem:[#allocation2] sm:$0xff]
    %v222 = vld [vmem:[#allocation2 + $0x8] sm:$0xff]
    %v223 = vld [vmem:[#allocation2 + $0x10] sm:$0x3]
    %v224 = vld [vmem:[#allocation2 + $0x18] sm:$0xff]
    %v225 = vld [vmem:[#allocation2 + $0x20] sm:$0xff]
    %v226 = vld [vmem:[#allocation2 + $0x28] sm:$0x3]
    %v227 = vld [vmem:[#allocation2 + $0x30] sm:$0xff]
    %v228 = vld [vmem:[#allocation2 + $0x38] sm:$0xff]
    %v229 = vld [vmem:[#allocation2 + $0x40] sm:$0x3]
    %v230 = vld [vmem:[#allocation2 + $0x48] sm:$0xff]
    %v231 = vld [vmem:[#allocation2 + $0x50] sm:$0xff]
    %v232 = vld [vmem:[#allocation2 + $0x58] sm:$0x3]
    %v233 = vld [vmem:[#allocation2 + $0x60] sm:$0xff]
    %v234 = vld [vmem:[#allocation2 + $0x68] sm:$0xff]
    %v235 = vld [vmem:[#allocation2 + $0x70] sm:$0x3]
    %v236 = vld [vmem:[#allocation2 + $0x78] sm:$0xff]
    %v237 = vld [vmem:[#allocation2 + $0x80] sm:$0xff]
    %v238 = vld [vmem:[#allocation2 + $0x88] sm:$0x3]
    %v239 = vld [vmem:[#allocation2 + $0x90] sm:$0xff]
    %v240 = vld [vmem:[#allocation2 + $0x98] sm:$0xff]
    %v241 = vld [vmem:[#allocation2 + $0xa0] sm:$0x3]
    %v242 = vld [vmem:[#allocation2 + $0xa8] sm:$0xff]
    %v243 = vld [vmem:[#allocation2 + $0xb0] sm:$0xff]
    %v244 = vld [vmem:[#allocation2 + $0xb8] sm:$0x3]
    %269 = vrot.lane.b32.xlu0 %v221, 127
    %v270 = vpop.permute.xlu0 %269
    %271 = vrot.lane.b32.xlu0 %v222, 127
    %v272 = vpop.permute.xlu0 %271
    %273 = vrot.lane.b32.xlu0 %v223, 127
    %v274 = vpop.permute.xlu0 %273
    %275 = vrot.lane.b32.xlu0 %v224, 127
    %v276 = vpop.permute.xlu0 %275
    %277 = vrot.lane.b32.xlu0 %v225, 127
    %v278 = vpop.permute.xlu0 %277
    %279 = vrot.lane.b32.xlu0 %v226, 127
    %v280 = vpop.permute.xlu0 %279
    %281 = vrot.lane.b32.xlu0 %v227, 127
    %v282 = vpop.permute.xlu0 %281
    %283 = vrot.lane.b32.xlu0 %v228, 127
    %v284 = vpop.permute.xlu0 %283
    %285 = vrot.lane.b32.xlu0 %v229, 127
    %v286 = vpop.permute.xlu0 %285
    %287 = vrot.lane.b32.xlu0 %v230, 127
    %v288 = vpop.permute.xlu0 %287
    %289 = vrot.lane.b32.xlu0 %v231, 127
    %v290 = vpop.permute.xlu0 %289
    %291 = vrot.lane.b32.xlu0 %v232, 127
    %v292 = vpop.permute.xlu0 %291
    %293 = vrot.lane.b32.xlu0 %v233, 127
    %v294 = vpop.permute.xlu0 %293
    %295 = vrot.lane.b32.xlu0 %v234, 127
    %v296 = vpop.permute.xlu0 %295
    %297 = vrot.lane.b32.xlu0 %v235, 127
    %v298 = vpop.permute.xlu0 %297
    %299 = vrot.lane.b32.xlu0 %v236, 127
    %v300 = vpop.permute.xlu0 %299
    %301 = vrot.lane.b32.xlu0 %v237, 127
    %v302 = vpop.permute.xlu0 %301
    %303 = vrot.lane.b32.xlu0 %v238, 127
    %v304 = vpop.permute.xlu0 %303
    %305 = vrot.lane.b32.xlu0 %v239, 127
    %v306 = vpop.permute.xlu0 %305
    %307 = vrot.lane.b32.xlu0 %v240, 127
    %v308 = vpop.permute.xlu0 %307
    %309 = vrot.lane.b32.xlu0 %v241, 127
    %v310 = vpop.permute.xlu0 %309
    %311 = vrot.lane.b32.xlu0 %v242, 127
    %v312 = vpop.permute.xlu0 %311
    %313 = vrot.lane.b32.xlu0 %v243, 127
    %v314 = vpop.permute.xlu0 %313
    %315 = vrot.lane.b32.xlu0 %v244, 127
    %v316 = vpop.permute.xlu0 %315
    %v341 = vmax.f32 %v221, %v270
    %v342 = vmax.f32 %v222, %v272
    %v343 = vmax.f32 %v223, %v274
    %v344 = vmax.f32 %v224, %v276
    %v345 = vmax.f32 %v225, %v278
    %v346 = vmax.f32 %v226, %v280
    %v347 = vmax.f32 %v227, %v282
    %v348 = vmax.f32 %v228, %v284
    %v349 = vmax.f32 %v229, %v286
    %v350 = vmax.f32 %v230, %v288
    %v351 = vmax.f32 %v231, %v290
    %v352 = vmax.f32 %v232, %v292
    %v353 = vmax.f32 %v233, %v294
    %v354 = vmax.f32 %v234, %v296
    %v355 = vmax.f32 %v235, %v298
    %v356 = vmax.f32 %v236, %v300
    %v357 = vmax.f32 %v237, %v302
    %v358 = vmax.f32 %v238, %v304
    %v359 = vmax.f32 %v239, %v306
    %v360 = vmax.f32 %v240, %v308
    %v361 = vmax.f32 %v241, %v310
    %v362 = vmax.f32 %v242, %v312
    %v363 = vmax.f32 %v243, %v314
    %v364 = vmax.f32 %v244, %v316
    %365 = vrot.lane.b32.xlu0 %v221, 126
    %v366 = vpop.permute.xlu0 %365
    %367 = vrot.lane.b32.xlu0 %v222, 126
    %v368 = vpop.permute.xlu0 %367
    %369 = vrot.lane.b32.xlu0 %v223, 126
    %v370 = vpop.permute.xlu0 %369
    %371 = vrot.lane.b32.xlu0 %v224, 126
    %v372 = vpop.permute.xlu0 %371
    %373 = vrot.lane.b32.xlu0 %v225, 126
    %v374 = vpop.permute.xlu0 %373
    %375 = vrot.lane.b32.xlu0 %v226, 126
    %v376 = vpop.permute.xlu0 %375
    %377 = vrot.lane.b32.xlu0 %v227, 126
    %v378 = vpop.permute.xlu0 %377
    %379 = vrot.lane.b32.xlu0 %v228, 126
    %v380 = vpop.permute.xlu0 %379
    %381 = vrot.lane.b32.xlu0 %v229, 126
    %v382 = vpop.permute.xlu0 %381
    %383 = vrot.lane.b32.xlu0 %v230, 126
    %v384 = vpop.permute.xlu0 %383
    %385 = vrot.lane.b32.xlu0 %v231, 126
    %v386 = vpop.permute.xlu0 %385
    %387 = vrot.lane.b32.xlu0 %v232, 126
    %v388 = vpop.permute.xlu0 %387
    %389 = vrot.lane.b32.xlu0 %v233, 126
    %v390 = vpop.permute.xlu0 %389
    %391 = vrot.lane.b32.xlu0 %v234, 126
    %v392 = vpop.permute.xlu0 %391
    %393 = vrot.lane.b32.xlu0 %v235, 126
    %v394 = vpop.permute.xlu0 %393
    %395 = vrot.lane.b32.xlu0 %v236, 126
    %v396 = vpop.permute.xlu0 %395
    %397 = vrot.lane.b32.xlu0 %v237, 126
    %v398 = vpop.permute.xlu0 %397
    %399 = vrot.lane.b32.xlu0 %v238, 126
    %v400 = vpop.permute.xlu0 %399
    %401 = vrot.lane.b32.xlu0 %v239, 126
    %v402 = vpop.permute.xlu0 %401
    %403 = vrot.lane.b32.xlu0 %v240, 126
    %v404 = vpop.permute.xlu0 %403
    %405 = vrot.lane.b32.xlu0 %v241, 126
    %v406 = vpop.permute.xlu0 %405
    %407 = vrot.lane.b32.xlu0 %v242, 126
    %v408 = vpop.permute.xlu0 %407
    %409 = vrot.lane.b32.xlu0 %v243, 126
    %v410 = vpop.permute.xlu0 %409
    %411 = vrot.lane.b32.xlu0 %v244, 126
    %v412 = vpop.permute.xlu0 %411
    %v437 = vmax.f32 %v341, %v366
    %v438 = vmax.f32 %v342, %v368
    %v439 = vmax.f32 %v343, %v370
    %v440 = vmax.f32 %v344, %v372
    %v441 = vmax.f32 %v345, %v374
    %v442 = vmax.f32 %v346, %v376
    %v443 = vmax.f32 %v347, %v378
    %v444 = vmax.f32 %v348, %v380
    %v445 = vmax.f32 %v349, %v382
    %v446 = vmax.f32 %v350, %v384
    %v447 = vmax.f32 %v351, %v386
    %v448 = vmax.f32 %v352, %v388
    %v449 = vmax.f32 %v353, %v390
    %v450 = vmax.f32 %v354, %v392
    %v451 = vmax.f32 %v355, %v394
    %v452 = vmax.f32 %v356, %v396
    %v453 = vmax.f32 %v357, %v398
    %v454 = vmax.f32 %v358, %v400
    %v455 = vmax.f32 %v359, %v402
    %v456 = vmax.f32 %v360, %v404
    %v457 = vmax.f32 %v361, %v406
    %v458 = vmax.f32 %v362, %v408
    %v459 = vmax.f32 %v363, %v410
    %v460 = vmax.f32 %v364, %v412
    %vm485 = vcmask 1046528
    %v486 = vrot.slane %v437, 1
    %v487 = vrot.slane %v438, 1
    %v488 = vsel %vm485, %v486, %v487
    %v489 = vrot.slane %v439, 1
    %v490 = vsel %vm485, %v487, %v489
    %v491 = vrot.slane %v440, 1
    %v492 = vrot.slane %v441, 1
    %v493 = vsel %vm485, %v491, %v492
    %v494 = vrot.slane %v442, 1
    %v495 = vsel %vm485, %v492, %v494
    %v496 = vrot.slane %v443, 1
    %v497 = vrot.slane %v444, 1
    %v498 = vsel %vm485, %v496, %v497
    %v499 = vrot.slane %v445, 1
    %v500 = vsel %vm485, %v497, %v499
    %v501 = vrot.slane %v446, 1
    %v502 = vrot.slane %v447, 1
    %v503 = vsel %vm485, %v501, %v502
    %v504 = vrot.slane %v448, 1
    %v505 = vsel %vm485, %v502, %v504
    %v506 = vrot.slane %v449, 1
    %v507 = vrot.slane %v450, 1
    %v508 = vsel %vm485, %v506, %v507
    %v509 = vrot.slane %v451, 1
    %v510 = vsel %vm485, %v507, %v509
    %v511 = vrot.slane %v452, 1
    %v512 = vrot.slane %v453, 1
    %v513 = vsel %vm485, %v511, %v512
    %v514 = vrot.slane %v454, 1
    %v515 = vsel %vm485, %v512, %v514
    %v516 = vrot.slane %v455, 1
    %v517 = vrot.slane %v456, 1
    %v518 = vsel %vm485, %v516, %v517
    %v519 = vrot.slane %v457, 1
    %v520 = vsel %vm485, %v517, %v519
    %v521 = vrot.slane %v458, 1
    %v522 = vrot.slane %v459, 1
    %v523 = vsel %vm485, %v521, %v522
    %v524 = vrot.slane %v460, 1
    %v525 = vsel %vm485, %v522, %v524
    %v542 = vmax.f32 %v437, %v488
    %v543 = vmax.f32 %v438, %v490
    %v544 = vmax.f32 %v440, %v493
    %v545 = vmax.f32 %v441, %v495
    %v546 = vmax.f32 %v443, %v498
    %v547 = vmax.f32 %v444, %v500
    %v548 = vmax.f32 %v446, %v503
    %v549 = vmax.f32 %v447, %v505
    %v550 = vmax.f32 %v449, %v508
    %v551 = vmax.f32 %v450, %v510
    %v552 = vmax.f32 %v452, %v513
    %v553 = vmax.f32 %v453, %v515
    %v554 = vmax.f32 %v455, %v518
    %v555 = vmax.f32 %v456, %v520
    %v556 = vmax.f32 %v458, %v523
    %v557 = vmax.f32 %v459, %v525
    %vm558 = vcmask 1045504
    %v559 = vrot.slane %v437, 2
    %v560 = vrot.slane %v438, 2
    %v561 = vsel %vm558, %v559, %v560
    %v562 = vrot.slane %v439, 2
    %v563 = vsel %vm558, %v560, %v562
    %v564 = vrot.slane %v440, 2
    %v565 = vrot.slane %v441, 2
    %v566 = vsel %vm558, %v564, %v565
    %v567 = vrot.slane %v442, 2
    %v568 = vsel %vm558, %v565, %v567
    %v569 = vrot.slane %v443, 2
    %v570 = vrot.slane %v444, 2
    %v571 = vsel %vm558, %v569, %v570
    %v572 = vrot.slane %v445, 2
    %v573 = vsel %vm558, %v570, %v572
    %v574 = vrot.slane %v446, 2
    %v575 = vrot.slane %v447, 2
    %v576 = vsel %vm558, %v574, %v575
    %v577 = vrot.slane %v448, 2
    %v578 = vsel %vm558, %v575, %v577
    %v579 = vrot.slane %v449, 2
    %v580 = vrot.slane %v450, 2
    %v581 = vsel %vm558, %v579, %v580
    %v582 = vrot.slane %v451, 2
    %v583 = vsel %vm558, %v580, %v582
    %v584 = vrot.slane %v452, 2
    %v585 = vrot.slane %v453, 2
    %v586 = vsel %vm558, %v584, %v585
    %v587 = vrot.slane %v454, 2
    %v588 = vsel %vm558, %v585, %v587
    %v589 = vrot.slane %v455, 2
    %v590 = vrot.slane %v456, 2
    %v591 = vsel %vm558, %v589, %v590
    %v592 = vrot.slane %v457, 2
    %v593 = vsel %vm558, %v590, %v592
    %v594 = vrot.slane %v458, 2
    %v595 = vrot.slane %v459, 2
    %v596 = vsel %vm558, %v594, %v595
    %v597 = vrot.slane %v460, 2
    %v598 = vsel %vm558, %v595, %v597
    %v615 = vmax.f32 %v542, %v561
    %v616 = vmax.f32 %v543, %v563
    %v617 = vmax.f32 %v544, %v566
    %v618 = vmax.f32 %v545, %v568
    %v619 = vmax.f32 %v546, %v571
    %v620 = vmax.f32 %v547, %v573
    %v621 = vmax.f32 %v548, %v576
    %v622 = vmax.f32 %v549, %v578
    %v623 = vmax.f32 %v550, %v581
    %v624 = vmax.f32 %v551, %v583
    %v625 = vmax.f32 %v552, %v586
    %v626 = vmax.f32 %v553, %v588
    %v627 = vmax.f32 %v554, %v591
    %v628 = vmax.f32 %v555, %v593
    %v629 = vmax.f32 %v556, %v596
    %v630 = vmax.f32 %v557, %v598
    %vm631 = vcmask 130048
    %v632 = vsel %vm631, %v615, 0.0
    %v633 = vsel %vm631, %v617, 0.0
    %v634 = vadd.f32 %v632, %v633
    %v635 = vsel %vm631, %v619, 0.0
    %v636 = vadd.f32 %v634, %v635
    %v637 = vsel %vm631, %v621, 0.0
    %v638 = vadd.f32 %v636, %v637
    %v639 = vsel %vm631, %v623, 0.0
    %v640 = vadd.f32 %v638, %v639
    %v641 = vsel %vm631, %v625, 0.0
    %v642 = vadd.f32 %v640, %v641
    %v643 = vsel %vm631, %v627, 0.0
    %v644 = vadd.f32 %v642, %v643
    %v645 = vsel %vm631, %v629, 0.0
    %v646 = vadd.f32 %v644, %v645
    %v647 = vsel %vm631, %v616, 0.0
    %v648 = vsel %vm631, %v618, 0.0
    %v649 = vadd.f32 %v647, %v648
    %v650 = vsel %vm631, %v620, 0.0
    %v651 = vadd.f32 %v649, %v650
    %v652 = vsel %vm631, %v622, 0.0
    %v653 = vadd.f32 %v651, %v652
    %v654 = vsel %vm631, %v624, 0.0
    %v655 = vadd.f32 %v653, %v654
    %v656 = vsel %vm631, %v626, 0.0
    %v657 = vadd.f32 %v655, %v656
    %v658 = vsel %vm631, %v628, 0.0
    %v659 = vadd.f32 %v657, %v658
    %v660 = vsel %vm631, %v630, 0.0
    %v661 = vadd.f32 %v659, %v660
    %v662 = vsel %vm631, %v646, 0.0
    %v663 = vsel %vm631, %v661, 0.0
    %v664 = vadd.f32 %v662, %v663
    %v665 = vrot.slane %v664, 4
    %v666 = vadd.f32 %v664, %v665
    %v667 = vrot.slane %v666, 2
    %v668 = vadd.f32 %v666, %v667
    %v669 = vrot.slane %v668, 1
    %v670 = vadd.f32 %v668, %v669
    %vm671 = vcmask 122880
    %672 = vst.msk [vmem:[#allocation6] sm:$0x1] %vm671, %v670
    // Predicated region
    $region10: #{tpu_custom_call.1} parent=1 // pred_check
      _
    $region11: #{tpu_custom_call.1} parent=1 // pred_check_branch
      %674 = sbr.rel (0) target = $region13
    $region12: #{tpu_custom_call.1} parent=1 // pred_region
      %s676 = ssub.s32 16, 16
      %677 = vsyncadd [#allocation5], %s676
      %s679 = sshll.u32 [#allocation6], 4
      %s680 = int_to_ptr.vmem [resolvable:$true] %s679
      %682 = dma.vmem_to_hbm [thread:$0]  %s680, 16, %s1, [#allocation5]
    $region13: #{tpu_custom_call.1} parent=1 // pred_fallthru
      _
    // Predicated region
    $region14: #{tpu_custom_call.1} parent=1 // pred_check
      _
    $region15: #{tpu_custom_call.1} parent=1 // pred_check_branch
      %684 = sbr.rel (0) target = $region17
    $region16: #{tpu_custom_call.1} parent=1 // pred_region
      %685 = dma.done [#allocation5], 16
    $region17: #{tpu_custom_call.1} parent=1 // pred_fallthru
      _
    %686 = vsyncpa [#allocation4], 1
    %687 = vsyncpa [#allocation5], 1

</llo_original>
